<compile_context>
chip_gen: v6e
topology: v6e:2x2x1
jax: 0.10.0
libtpu: 0.0.40
codegen_flags: <defaults>
</compile_context>

<pallas_src>
import functools

import jax
import jax.numpy as jnp
import numpy as np
from jax import lax
from jax.experimental import pallas as pl
from jax.experimental.pallas import tpu as pltpu


def _tv_partial_kernel(x_ref, oh_ref, ow_ref):
    # x_ref: (block_n, H, W) block of B*C images, native dtype, resident in VMEM.
    block_n, H, W = x_ref.shape

    # Validity masks for the rolled (wrapped) differences; hoisted out of the
    # loop so the broadcast is built once, not per iteration.
    row_ok = (lax.broadcasted_iota(jnp.int32, (H, W), 0) < (H - 1)).astype(jnp.float32)
    col_ok = (lax.broadcasted_iota(jnp.int32, (H, W), 1) < (W - 1)).astype(jnp.float32)

    def body(i, carry):
        h_acc, w_acc = carry
        xi = x_ref[i].astype(jnp.float32)              # (H, W), f32 compute/accum
        # roll by (size-1) == roll by -1: rolled[r] = x[(r+1) mod size].
        dh = pltpu.roll(xi, H - 1, axis=0) - xi        # dh[r] = x[r+1] - x[r] (wrap at r=H-1)
        dw = pltpu.roll(xi, W - 1, axis=1) - xi        # dw[c] = x[c+1] - x[c] (wrap at c=W-1)
        h_sq = dh * dh * row_ok                        # zero the wrapped row
        w_sq = dw * dw * col_ok                        # zero the wrapped col
        # Staged reduction: sublane reduce -> lane reduce, shapes stay 2-D.
        h_acc = h_acc + jnp.sum(h_sq, axis=0, keepdims=True).sum(axis=1, keepdims=True)
        w_acc = w_acc + jnp.sum(w_sq, axis=0, keepdims=True).sum(axis=1, keepdims=True)
        return h_acc, w_acc

    zero = jnp.zeros((1, 1), jnp.float32)
    h_tot, w_tot = lax.fori_loop(0, block_n, body, (zero, zero))

    # Lane-dense, unmasked full-tile stores; only element [0, 0, 0] is consumed.
    oh_ref[...] = jnp.broadcast_to(h_tot, (8, 128))[None]
    ow_ref[...] = jnp.broadcast_to(w_tot, (8, 128))[None]


def _largest_divisor_le(n, cap):
    cap = max(1, min(n, cap))
    for d in range(cap, 0, -1):
        if n % d == 0:
            return d
    return 1


def tv_loss(x, tv_loss_weight=1.0, block_n=None, block_bytes=8 << 20):
    """Total-variation loss with the exact semantics of PyTorch L_TV.forward."""
    B, C, H, W = x.shape
    N = B * C
    xr = x.reshape(N, H, W)                    # native dtype, no copy / no cast
    itemsize = xr.dtype.itemsize

    # Pick block_n as a divisor of N so the grid tiles N exactly (no padding).
    if block_n is None:
        cap = max(1, block_bytes // (H * W * itemsize))
        block_n = _largest_divisor_le(N, cap)
    else:
        block_n = _largest_divisor_le(N, block_n)
    grid = N // block_n

    cost = pl.CostEstimate(
        flops=6 * N * H * W,
        transcendentals=0,
        bytes_accessed=N * H * W * itemsize + 2 * grid * 8 * 128 * 4,
    )

    oh, ow = pl.pallas_call(
        _tv_partial_kernel,
        out_shape=(
            jax.ShapeDtypeStruct((grid, 8, 128), jnp.float32),
            jax.ShapeDtypeStruct((grid, 8, 128), jnp.float32),
        ),
        grid=(grid,),
        in_specs=[pl.BlockSpec((block_n, H, W), lambda i: (i, 0, 0))],
        out_specs=(
            pl.BlockSpec((1, 8, 128), lambda i: (i, 0, 0)),
            pl.BlockSpec((1, 8, 128), lambda i: (i, 0, 0)),
        ),
        compiler_params=pltpu.CompilerParams(
            dimension_semantics=("parallel",),
            vmem_limit_bytes=32 * 1024 * 1024,  # safe on v5e/v6e/v7x; covers 2x 8MiB blocks
        ),
        cost_estimate=cost,
    )(xr)

    # O(grid) combine + scalar normalization (pure glue).
    h_tv = jnp.sum(oh[:, 0, 0])
    w_tv = jnp.sum(ow[:, 0, 0])
    count_h = (H - 1) * W          # same H==1 / W==1 division semantics as PyTorch
    count_w = H * (W - 1)
    return tv_loss_weight * 2.0 * (h_tv / count_h + w_tv / count_w) / B


def tv_loss_ref(x, tv_loss_weight=1.0):
    """Pure-JAX reference mirroring the PyTorch module (for validation)."""
    B, _, H, W = x.shape
    count_h = (H - 1) * W
    count_w = H * (W - 1)
    h_tv = jnp.sum((x[:, :, 1:, :] - x[:, :, :H - 1, :]) ** 2)
    w_tv = jnp.sum((x[:, :, :, 1:] - x[:, :, :, :W - 1]) ** 2)
    return tv_loss_weight * 2.0 * (h_tv / count_h + w_tv / count_w) / B


if __name__ == "__main__":
    key = jax.random.PRNGKey(0)
    B, C, H, W = 2, 4, 16, 16
    x = jax.random.uniform(key, (B, C, H, W), jnp.float32, -1.0, 1.0)
    ref = tv_loss_ref(x)

    # Default block selection (single block at this toy size).
    out1 = jax.jit(tv_loss)(x)
    jax.block_until_ready(out1)
    np.testing.assert_allclose(np.asarray(out1), np.asarray(ref),
                               rtol=1e-5, atol=1e-6)

    # Forced multi-block grid (grid=4): exercises the pipelined / parallel path.
    out2 = jax.jit(functools.partial(tv_loss, block_n=2))(x)
    jax.block_until_ready(out2)
    np.testing.assert_allclose(np.asarray(out2), np.asarray(ref),
                               rtol=1e-5, atol=1e-6)

    # bf16 input streamed in native dtype (half the HBM bytes), f32 accumulation.
    xb = x.astype(jnp.bfloat16)
    outb = jax.jit(functools.partial(tv_loss, block_n=4))(xb)
    jax.block_until_ready(outb)
    refb = tv_loss_ref(xb.astype(jnp.float32))
    np.testing.assert_allclose(np.asarray(outb), np.asarray(refb),
                               rtol=5e-2, atol=1e-3)

    assert out1.shape == () and out1.dtype == jnp.float32
    print("KERNEL_OK")
</pallas_src>

<mosaic_0001>
module attributes {stable_mosaic.version = 11 : i64} {
  func.func @_tv_partial_kernel(%arg0: i32, %arg1: memref<8x16x16xf32, #tpu.memory_space<vmem>>, %arg2: memref<1x8x128xf32, #tpu.memory_space<vmem>>, %arg3: memref<1x8x128xf32, #tpu.memory_space<vmem>>) attributes {dimension_semantics = [#tpu.dimension_semantics<parallel>], iteration_bounds = array<i64: 1>, scalar_prefetch = 0 : i64, scratch_operands = 0 : i64, tpu.core_type = #tpu.core_type<tc>, window_params = [{transform_indices = @transform_0, window_bounds = array<i64: 8, 16, 16>}, {transform_indices = @transform_1, window_bounds = array<i64: 1, 8, 128>}, {transform_indices = @transform_2, window_bounds = array<i64: 1, 8, 128>}]} {
    %0 = tpu.iota {dimensions = array<i32: 0>} : vector<16x16xi32>
    %c15_i32 = arith.constant 15 : i32
    %1 = vector.broadcast %c15_i32 : i32 to vector<16x16xi32>
    %2 = arith.cmpi slt, %0, %1 : vector<16x16xi32>
    %3 = arith.extui %2 : vector<16x16xi1> to vector<16x16xi32>
    %4 = arith.sitofp %3 : vector<16x16xi32> to vector<16x16xf32>
    %5 = tpu.iota {dimensions = array<i32: 1>} : vector<16x16xi32>
    %c15_i32_0 = arith.constant 15 : i32
    %6 = vector.broadcast %c15_i32_0 : i32 to vector<16x16xi32>
    %7 = arith.cmpi slt, %5, %6 : vector<16x16xi32>
    %8 = arith.extui %7 : vector<16x16xi1> to vector<16x16xi32>
    %9 = arith.sitofp %8 : vector<16x16xi32> to vector<16x16xf32>
    %cst = arith.constant 0.000000e+00 : f32
    %10 = vector.broadcast %cst : f32 to vector<1x1xf32>
    %c0_i32 = arith.constant 0 : i32
    %c8_i32 = arith.constant 8 : i32
    %11 = arith.addi %c0_i32, %c8_i32 : i32
    %c1_i32 = arith.constant 1 : i32
    %12:2 = scf.for %arg4 = %c0_i32 to %11 step %c1_i32 iter_args(%arg5 = %10, %arg6 = %10) -> (vector<1x1xf32>, vector<1x1xf32>)  : i32 {
      %21 = arith.index_cast %arg4 : i32 to index
      %c0_7 = arith.constant 0 : index
      %c0_8 = arith.constant 0 : index
      %22 = vector.load %arg1[%21, %c0_7, %c0_8] : memref<8x16x16xf32, #tpu.memory_space<vmem>>, vector<1x16x16xf32>
      %23 = vector.shape_cast %22 : vector<1x16x16xf32> to vector<16x16xf32>
      %c15_i32_9 = arith.constant 15 : i32
      %24 = tpu.dynamic_rotate %23 by %c15_i32_9 dim 0 : vector<16x16xf32>, i32 -> vector<16x16xf32>
      %25 = arith.subf %24, %23 : vector<16x16xf32>
      %c15_i32_10 = arith.constant 15 : i32
      %26 = tpu.dynamic_rotate %23 by %c15_i32_10 dim 1 : vector<16x16xf32>, i32 -> vector<16x16xf32>
      %27 = arith.subf %26, %23 : vector<16x16xf32>
      %28 = arith.mulf %25, %25 : vector<16x16xf32>
      %29 = arith.mulf %28, %4 : vector<16x16xf32>
      %30 = arith.mulf %27, %27 : vector<16x16xf32>
      %31 = arith.mulf %30, %9 : vector<16x16xf32>
      %cst_11 = arith.constant dense<0.000000e+00> : vector<16xf32>
      %32 = vector.multi_reduction <add>, %29, %cst_11 [0] : vector<16x16xf32> to vector<16xf32>
      %33 = vector.shape_cast %32 : vector<16xf32> to vector<1x16xf32>
      %cst_12 = arith.constant dense<0.000000e+00> : vector<1xf32>
      %34 = vector.multi_reduction <add>, %33, %cst_12 [1] : vector<1x16xf32> to vector<1xf32>
      %35 = vector.shape_cast %34 : vector<1xf32> to vector<1x1xf32>
      %36 = arith.addf %arg5, %35 : vector<1x1xf32>
      %cst_13 = arith.constant dense<0.000000e+00> : vector<16xf32>
      %37 = vector.multi_reduction <add>, %31, %cst_13 [0] : vector<16x16xf32> to vector<16xf32>
      %38 = vector.shape_cast %37 : vector<16xf32> to vector<1x16xf32>
      %cst_14 = arith.constant dense<0.000000e+00> : vector<1xf32>
      %39 = vector.multi_reduction <add>, %38, %cst_14 [1] : vector<1x16xf32> to vector<1xf32>
      %40 = vector.shape_cast %39 : vector<1xf32> to vector<1x1xf32>
      %41 = arith.addf %arg6, %40 : vector<1x1xf32>
      scf.yield %36, %41 : vector<1x1xf32>, vector<1x1xf32>
    }
    %c8_i32_1 = arith.constant 8 : i32
    %13 = vector.shape_cast %12#0 : vector<1x1xf32> to vector<1x1xf32>
    %14 = vector.broadcast %13 : vector<1x1xf32> to vector<8x128xf32>
    %15 = vector.shape_cast %14 : vector<8x128xf32> to vector<1x8x128xf32>
    %c0 = arith.constant 0 : index
    %c0_2 = arith.constant 0 : index
    %c0_3 = arith.constant 0 : index
    %16 = vector.load %arg2[%c0, %c0_2, %c0_3] : memref<1x8x128xf32, #tpu.memory_space<vmem>>, vector<1x8x128xf32>
    tpu.vector_store %arg2[%c0, %c0_2, %c0_3], %15 {strides = array<i32>} : memref<1x8x128xf32, #tpu.memory_space<vmem>>, vector<1x8x128xf32>,
    %17 = vector.shape_cast %12#1 : vector<1x1xf32> to vector<1x1xf32>
    %18 = vector.broadcast %17 : vector<1x1xf32> to vector<8x128xf32>
    %19 = vector.shape_cast %18 : vector<8x128xf32> to vector<1x8x128xf32>
    %c0_4 = arith.constant 0 : index
    %c0_5 = arith.constant 0 : index
    %c0_6 = arith.constant 0 : index
    %20 = vector.load %arg3[%c0_4, %c0_5, %c0_6] : memref<1x8x128xf32, #tpu.memory_space<vmem>>, vector<1x8x128xf32>
    tpu.vector_store %arg3[%c0_4, %c0_5, %c0_6], %19 {strides = array<i32>} : memref<1x8x128xf32, #tpu.memory_space<vmem>>, vector<1x8x128xf32>,
    return
  }
  func.func @transform_0(%arg0: i32) -> (i32, i32, i32) {
    %c0_i32 = arith.constant 0 : i32
    %c0_i32_0 = arith.constant 0 : i32
    %c0_i32_1 = arith.constant 0 : i32
    return %arg0, %c0_i32, %c0_i32_0 : i32, i32, i32
  }
  func.func @transform_1(%arg0: i32) -> (i32, i32, i32) {
    %c0_i32 = arith.constant 0 : i32
    %c0_i32_0 = arith.constant 0 : i32
    %c0_i32_1 = arith.constant 0 : i32
    return %arg0, %c0_i32, %c0_i32_0 : i32, i32, i32
  }
  func.func @transform_2(%arg0: i32) -> (i32, i32, i32) {
    %c0_i32 = arith.constant 0 : i32
    %c0_i32_0 = arith.constant 0 : i32
    %c0_i32_1 = arith.constant 0 : i32
    return %arg0, %c0_i32, %c0_i32_0 : i32, i32, i32
  }
}

</mosaic_0001>

<llo_original>
// kernel: tv_loss.1
$region0: #{tv_loss.1}
  #allocation0 [shape = 'u32[]', space=smem, size = 0x4, offset = 0x4, fixed_abs, tag = 'smem constant byte address 0x4 - core index']
  #allocation1 [shape = 'u32[144,128]{1,0:T(1,128)}', space=vmem, size = 0x12000, scoped, tag = 'internal scratch']
  %s0 = inlined_call_operand.hbm [shape: f32[8,16,16], index: 0, kind: input, shape index: {}]
  %s1 = inlined_call_operand.vmem [shape: f32[1,8,128], index: 1, kind: output, shape index: {0}]
  %s2 = inlined_call_operand.vmem [shape: f32[1,8,128], index: 2, kind: output, shape index: {1}]
  %3 = xla_tuple %s1, %s2
  %s4 = sld [smem:[#allocation0]]
  $region33: #{tv_loss.1} parent=0
    _
  %s6 = ssub.s32 1, %s4
  %s7 = scalar_select 0, %s6, %s4
  $region1: #{tv_loss.1} parent=0
    #allocation2 [shape = 'u8[65536]{0}', space=vmem, size = 0x10000, scoped, tag = 'input window, operand 0, single buffered']
    #allocation3 [shape = 's32[1]{0}', space=sflag, size = 0x4, scoped, tag = 'scoped memory for tv_loss.1']
    %8 = vsyncpa [#allocation3], 0
    // Predicated region
    $region2: #{tv_loss.1} parent=1 // pred_check
      _
    $region3: #{tv_loss.1} parent=1 // pred_check_branch
      %10 = sbr.rel (0) target = $region5
    $region4: #{tv_loss.1} parent=1 // pred_region
      %s12 = ssub.s32 2048, 2048
      %13 = vsyncadd [#allocation3], %s12
      %s14 = sshll.u32 [#allocation2], 4
      %s15 = int_to_ptr.vmem [resolvable:$true] %s14
      %20 = dma.hbm_to_vmem [thread:$0]  %s0, 2048, %s15, [#allocation3], 128, 128, 8
    $region5: #{tv_loss.1} parent=1 // pred_fallthru
      _
    // Predicated region
    $region6: #{tv_loss.1} parent=1 // pred_check
      _
    $region7: #{tv_loss.1} parent=1 // pred_check_branch
      %22 = sbr.rel (0) target = $region9
    $region8: #{tv_loss.1} parent=1 // pred_region
      %23 = dma.done [#allocation3], 2048
    $region9: #{tv_loss.1} parent=1 // pred_fallthru
      _
    %v24 = vlaneseq
    %v25 = vshrl.u32 %v24, 7
    %v26 = vadd.s32 %v25, 8
    %vm27 = vcmp.lt.s32.totalorder %v25, 15
    %vm28 = vcmp.lt.s32.totalorder %v26, 15
    %v29 = vsel %vm27, 1, 0
    %v30 = vsel %vm28, 1, 0
    %v31 = vcvt.s32.f32 %v29
    %v32 = vcvt.s32.f32 %v30
    %v33 = vlaneseq
    %v34 = vand.u32 %v33, 127
    %vm35 = vcmp.lt.s32.totalorder %v34, 15
    %v36 = vsel %vm35, 1, 0
    %v37 = vcvt.s32.f32 %v36
    loop: start=0, step=1, limit=8
    $region10: #{tv_loss.1} parent=1 // loop_pre_header
      _
    $region11: #{tv_loss.1} parent=1 // loop_header
      %s39 = sphi 0, %s43
      %p40 = scmp.ge.s32.totalorder %s39, 8
      %v44 = vphi 0.0, %v105
      %v45 = vphi 0.0, %v123
    $region12: #{tv_loss.1} parent=1 // loop_header_branch
      %42 = sbr.rel (%p40) target = $region16
    $region13: #{tv_loss.1} parent=1 // loop_body
      %s46 = smul.u32 %s39, 16
      %s47 = scalar_lea.vmem [#allocation2], %s46
      %v48 = vld [vmem:[%s47] sm:$0xff]
      %v49 = vld [vmem:[%s47 + $0x8] sm:$0xff]
      %v50 = vrot.slane %v48, 1
      %v51 = vrot.slane %v49, 1
      %vm52 = vcmp.lt.s32.totalorder %v25, 7
      %v53 = vsel %vm52, %v50, %v51
      %v54 = vsel %vm52, %v51, %v50
      %v55 = vsub.f32 %v53, %v48
      %v56 = vsub.f32 %v54, %v49
      %vm57 = vcmask 1047680
      %58 = vrot.lane.b32.xlu0 %v48, 16
      %v59 = vpop.permute.xlu0 %58
      %v60 = vsel %vm57, %v59, %v48
      %61 = vrot.lane.b32.xlu0 %v49, 16
      %v62 = vpop.permute.xlu0 %61
      %v63 = vsel %vm57, %v62, %v49
      %64 = vrot.lane.b32.xlu0 %v60, 16
      %v65 = vpop.permute.xlu0 %64
      %66 = vrot.lane.b32.xlu0 %v63, 16
      %v67 = vpop.permute.xlu0 %66
      %v68 = vsel %vm57, %v65, %v48
      %v69 = vsel %vm57, %v67, %v49
      %72 = vrot.lane.b32.xlu0 %v48, 1
      %v73 = vpop.permute.xlu0 %72
      %74 = vrot.lane.b32.xlu0 %v49, 1
      %v75 = vpop.permute.xlu0 %74
      %v78 = vsub.f32 %v68, %v73
      %v79 = vsub.f32 %v69, %v75
      %v80 = vmul.f32 %v55, %v55
      %v81 = vmul.f32 %v56, %v56
      %v82 = vmul.f32 %v80, %v31
      %v83 = vmul.f32 %v81, %v32
      %v84 = vmul.f32 %v78, %v78
      %v85 = vmul.f32 %v79, %v79
      %87 = vrot.lane.b32.xlu0 %v37, 1
      %v88 = vpop.permute.xlu0 %87
      %v90 = vmul.f32 %v84, %v88
      %v91 = vmul.f32 %v85, %v88
      %vm92 = vcmask 130048
      %v93 = vsel %vm92, %v82, 0.0
      %v94 = vsel %vm92, %v83, 0.0
      %v95 = vadd.f32 %v93, %v94
      %v96 = vrot.slane %v95, 4
      %v97 = vadd.f32 %v95, %v96
      %v98 = vrot.slane %v97, 2
      %v99 = vadd.f32 %v97, %v98
      %v100 = vrot.slane %v99, 1
      %v101 = vadd.f32 %v99, %v100
      %v102 = vsel %vm92, %v101, 0.0
      %103 = vadd.xlane.f32.xlu0 %v102
      %v104 = vpop.xlane.xlu0 %103
      %v105 = vadd.f32 %v44, %v104
      %vm106 = vcmask 138248
      %v107 = vsel %vm106, %v90, 0.0
      %v108 = vsel %vm106, %v91, 0.0
      %v109 = vadd.f32 %v107, %v108
      %v110 = vrot.slane %v109, 4
      %v111 = vadd.f32 %v109, %v110
      %v112 = vrot.slane %v111, 2
      %v113 = vadd.f32 %v111, %v112
      %v114 = vrot.slane %v113, 1
      %v115 = vadd.f32 %v113, %v114
      %117 = vrot.lane.b32.xlu0 %v115, 127
      %v118 = vpop.permute.xlu0 %117
      %v120 = vsel %vm92, %v118, 0.0
      %121 = vadd.xlane.f32.xlu0 %v120
      %v122 = vpop.xlane.xlu0 %121
      %v123 = vadd.f32 %v45, %v122
    $region14: #{tv_loss.1} parent=1 // loop_footer
      %s43 = sadd.s32 1, %s39
    $region15: #{tv_loss.1} parent=1 // loop_footer_branch
      %38 = sbr.rel target = $region11
    $region16: #{tv_loss.1} parent=1 // loop_exit
      _
    %124 = vst [vmem:[%s1] sm:$0xff] %v44
    %125 = vst [vmem:[%s2] sm:$0xff] %v45
    // Predicated region
    $region17: #{tv_loss.1} parent=1 // pred_check
      _
    $region18: #{tv_loss.1} parent=1 // pred_check_branch
      %127 = sbr.rel (0) target = $region20
    $region19: #{tv_loss.1} parent=1 // pred_region
      _
    $region20: #{tv_loss.1} parent=1 // pred_fallthru
      _
    // Predicated region
    $region21: #{tv_loss.1} parent=1 // pred_check
      _
    $region22: #{tv_loss.1} parent=1 // pred_check_branch
      %129 = sbr.rel (0) target = $region24
    $region23: #{tv_loss.1} parent=1 // pred_region
      _
    $region24: #{tv_loss.1} parent=1 // pred_fallthru
      _
    // Predicated region
    $region25: #{tv_loss.1} parent=1 // pred_check
      _
    $region26: #{tv_loss.1} parent=1 // pred_check_branch
      %131 = sbr.rel (0) target = $region28
    $region27: #{tv_loss.1} parent=1 // pred_region
      _
    $region28: #{tv_loss.1} parent=1 // pred_fallthru
      _
    // Predicated region
    $region29: #{tv_loss.1} parent=1 // pred_check
      _
    $region30: #{tv_loss.1} parent=1 // pred_check_branch
      %133 = sbr.rel (0) target = $region32
    $region31: #{tv_loss.1} parent=1 // pred_region
      _
    $region32: #{tv_loss.1} parent=1 // pred_fallthru
      _
    %134 = vsyncpa [#allocation3], 1

</llo_original>
